<compile_context>
chip_gen: v7x
topology: tpu7x:2x2x1
jax: 0.10.0
libtpu: 0.0.40
codegen_flags: <defaults>
</compile_context>

<pallas_src>
import jax
import jax.numpy as jnp
from jax.experimental import pallas as pl
from jax.experimental.pallas import tpu as pltpu


def _round_up(n, m):
    return ((n + m - 1) // m) * m


def mlp_kernel(x_ref, w1_ref, b1_ref, w2_ref, b2_ref, o_ref):
    # Layer 1: f32 matmul (MXU has plenty of slack), f32 bias + ReLU on the VPU.
    x = x_ref[...]                                                    # (TM, F) f32
    h = jnp.dot(x, w1_ref[...], preferred_element_type=jnp.float32)   # (TM, H) f32
    h = jnp.maximum(h + b1_ref[...], 0.0)
    # Layer 2: narrow (TM, O) result, written back with a tiny HBM DMA.
    y = jnp.dot(h, w2_ref[...], preferred_element_type=jnp.float32)   # (TM, O) f32
    o_ref[...] = y + b2_ref[...]


def mlp_simple_forward(x, w1, b1, w2, b2, *, tm=2048):
    """x: (B, W, D) float32. Returns logits (B, 2) float32."""
    B = x.shape[0]
    x_flat = x.reshape(B, -1)                      # glue reshape in JAX
    F = x_flat.shape[1]
    H = w1.shape[1]
    O = w2.shape[1]

    # Batch tile: multiple of 8 (f32 sublane), capped at `tm`, never larger
    # than B, and at large B capped near B/2 so v7x's two cores both get work.
    if B < 8:
        TM = B                                     # single block == full batch dim
    else:
        half = _round_up(pl.cdiv(B, 2), 16)        # >=2 grid steps at large B
        TM = min(tm, half, (B // 8) * 8)
        TM = max(8, (TM // 8) * 8)
    grid = (pl.cdiv(B, TM),)                       # ragged last tile: Pallas masks it

    b1_2d = b1.reshape(1, H).astype(jnp.float32)
    b2_2d = b2.reshape(1, O).astype(jnp.float32)

    const = lambda shape: pl.BlockSpec(shape, lambda i: (0, 0))  # resident params

    out = pl.pallas_call(
        mlp_kernel,
        out_shape=jax.ShapeDtypeStruct((B, O), jnp.float32),
        grid=grid,
        in_specs=[
            pl.BlockSpec((TM, F), lambda i: (i, 0)),   # stream x tiles (f32)
            const((F, H)),                             # w1 resident
            const((1, H)),                             # b1 resident
            const((H, O)),                             # w2 resident
            const((1, O)),                             # b2 resident
        ],
        out_specs=pl.BlockSpec((TM, O), lambda i: (i, 0)),  # narrow writeback
        compiler_params=pltpu.CompilerParams(
            dimension_semantics=("parallel",)),        # megacore split on v7x
    )(x_flat, w1, b1_2d, w2, b2_2d)

    return out


def init_params(key, input_dim, window_size, hidden_dim):
    """Deterministic synthetic params matching MLPSimple(num_layers=2) shapes."""
    flatten_dim = input_dim * window_size
    k1, k2, k3, k4 = jax.random.split(key, 4)
    w1 = jax.random.normal(k1, (flatten_dim, hidden_dim), jnp.float32) * 0.05
    b1 = jax.random.normal(k2, (hidden_dim,), jnp.float32) * 0.05
    w2 = jax.random.normal(k3, (hidden_dim, 2), jnp.float32) * 0.05
    b2 = jax.random.normal(k4, (2,), jnp.float32) * 0.05
    return w1, b1, w2, b2


def _reference(x, w1, b1, w2, b2):
    x_flat = x.reshape(x.shape[0], -1)
    return jnp.maximum(x_flat @ w1 + b1, 0.0) @ w2 + b2


if __name__ == "__main__":
    # Small shapes consistent with the module: batch=2, window=8, input_dim=4, hidden=32.
    B, W, D, H = 2, 8, 4, 32
    key = jax.random.PRNGKey(0)
    kx, kp, kb = jax.random.split(key, 3)

    w1, b1, w2, b2 = init_params(kp, input_dim=D, window_size=W, hidden_dim=H)

    # 1) Tiny-batch path (B=2 -> single grid step, block == full batch).
    x_small = jax.random.normal(kx, (B, W, D), jnp.float32)
    out_small = jax.block_until_ready(mlp_simple_forward(x_small, w1, b1, w2, b2))
    ref_small = _reference(x_small, w1, b1, w2, b2)
    assert out_small.shape == (B, 2)
    assert jnp.allclose(out_small, ref_small, atol=5e-3, rtol=5e-3), \
        "small-batch mismatch vs reference"

    # 2) Batched path exercising grid > 1 with a ragged last tile (B=250, TM=128).
    Bb = 250
    x_big = jax.random.normal(kb, (Bb, W, D), jnp.float32)
    out_big = jax.block_until_ready(
        mlp_simple_forward(x_big, w1, b1, w2, b2, tm=128))
    ref_big = _reference(x_big, w1, b1, w2, b2)
    assert out_big.shape == (Bb, 2)
    assert jnp.allclose(out_big, ref_big, atol=5e-3, rtol=5e-3), \
        "batched/ragged mismatch vs reference"

    print("KERNEL_OK")
</pallas_src>

<mosaic_0001>
module attributes {stable_mosaic.version = 11 : i64} {
  func.func @mlp_kernel(%arg0: i32, %arg1: memref<2x32xf32, #tpu.memory_space<vmem>>, %arg2: memref<32x32xf32, #tpu.memory_space<vmem>>, %arg3: memref<1x32xf32, #tpu.memory_space<vmem>>, %arg4: memref<32x2xf32, #tpu.memory_space<vmem>>, %arg5: memref<1x2xf32, #tpu.memory_space<vmem>>, %arg6: memref<2x2xf32, #tpu.memory_space<vmem>>) attributes {dimension_semantics = [#tpu.dimension_semantics<parallel>], iteration_bounds = array<i64: 1>, scalar_prefetch = 0 : i64, scratch_operands = 0 : i64, tpu.core_type = #tpu.core_type<tc>, window_params = [{transform_indices = @transform_0, window_bounds = array<i64: 2, 32>}, {pipeline_mode = #tpu.pipeline_mode<synchronous>, transform_indices = @transform_1, window_bounds = array<i64: 32, 32>}, {pipeline_mode = #tpu.pipeline_mode<synchronous>, transform_indices = @transform_2, window_bounds = array<i64: 1, 32>}, {pipeline_mode = #tpu.pipeline_mode<synchronous>, transform_indices = @transform_3, window_bounds = array<i64: 32, 2>}, {pipeline_mode = #tpu.pipeline_mode<synchronous>, transform_indices = @transform_4, window_bounds = array<i64: 1, 2>}, {transform_indices = @transform_5, window_bounds = array<i64: 2, 2>}]} {
    %c0 = arith.constant 0 : index
    %c0_0 = arith.constant 0 : index
    %0 = vector.load %arg1[%c0, %c0_0] : memref<2x32xf32, #tpu.memory_space<vmem>>, vector<2x32xf32>
    %c0_1 = arith.constant 0 : index
    %c0_2 = arith.constant 0 : index
    %1 = vector.load %arg2[%c0_1, %c0_2] : memref<32x32xf32, #tpu.memory_space<vmem>>, vector<32x32xf32>
    %cst = arith.constant dense<0.000000e+00> : vector<2x32xf32>
    %2 = tpu.matmul %0, %1, %cst {dimension_numbers = #tpu.dot_dimension_numbers<[1], [0], [0], [1], [0, 0, 1, 1], [], []>} : vector<2x32xf32>, vector<32x32xf32>, vector<2x32xf32> -> vector<2x32xf32>
    %c0_3 = arith.constant 0 : index
    %c0_4 = arith.constant 0 : index
    %3 = vector.load %arg3[%c0_3, %c0_4] : memref<1x32xf32, #tpu.memory_space<vmem>>, vector<1x32xf32>
    %4 = vector.broadcast %3 : vector<1x32xf32> to vector<2x32xf32>
    %5 = arith.addf %2, %4 : vector<2x32xf32>
    %cst_5 = arith.constant 0.000000e+00 : f32
    %6 = vector.broadcast %cst_5 : f32 to vector<2x32xf32>
    %7 = arith.maximumf %5, %6 : vector<2x32xf32>
    %c0_6 = arith.constant 0 : index
    %c0_7 = arith.constant 0 : index
    %8 = vector.load %arg4[%c0_6, %c0_7] : memref<32x2xf32, #tpu.memory_space<vmem>>, vector<32x2xf32>
    %cst_8 = arith.constant dense<0.000000e+00> : vector<2x2xf32>
    %9 = tpu.matmul %7, %8, %cst_8 {dimension_numbers = #tpu.dot_dimension_numbers<[1], [0], [0], [1], [0, 0, 1, 1], [], []>} : vector<2x32xf32>, vector<32x2xf32>, vector<2x2xf32> -> vector<2x2xf32>
    %c0_9 = arith.constant 0 : index
    %c0_10 = arith.constant 0 : index
    %10 = vector.load %arg5[%c0_9, %c0_10] : memref<1x2xf32, #tpu.memory_space<vmem>>, vector<1x2xf32>
    %11 = vector.broadcast %10 : vector<1x2xf32> to vector<2x2xf32>
    %12 = arith.addf %9, %11 : vector<2x2xf32>
    %c0_11 = arith.constant 0 : index
    %c0_12 = arith.constant 0 : index
    %13 = vector.load %arg6[%c0_11, %c0_12] : memref<2x2xf32, #tpu.memory_space<vmem>>, vector<2x2xf32>
    tpu.vector_store %arg6[%c0_11, %c0_12], %12 {strides = array<i32>} : memref<2x2xf32, #tpu.memory_space<vmem>>, vector<2x2xf32>,
    return
  }
  func.func @transform_0(%arg0: i32) -> (i32, i32) {
    %c0_i32 = arith.constant 0 : i32
    %c0_i32_0 = arith.constant 0 : i32
    return %arg0, %c0_i32 : i32, i32
  }
  func.func @transform_1(%arg0: i32) -> (i32, i32) {
    %c0_i32 = arith.constant 0 : i32
    %c0_i32_0 = arith.constant 0 : i32
    %c0_i32_1 = arith.constant 0 : i32
    return %c0_i32, %c0_i32_0 : i32, i32
  }
  func.func @transform_2(%arg0: i32) -> (i32, i32) {
    %c0_i32 = arith.constant 0 : i32
    %c0_i32_0 = arith.constant 0 : i32
    %c0_i32_1 = arith.constant 0 : i32
    return %c0_i32, %c0_i32_0 : i32, i32
  }
  func.func @transform_3(%arg0: i32) -> (i32, i32) {
    %c0_i32 = arith.constant 0 : i32
    %c0_i32_0 = arith.constant 0 : i32
    %c0_i32_1 = arith.constant 0 : i32
    return %c0_i32, %c0_i32_0 : i32, i32
  }
  func.func @transform_4(%arg0: i32) -> (i32, i32) {
    %c0_i32 = arith.constant 0 : i32
    %c0_i32_0 = arith.constant 0 : i32
    %c0_i32_1 = arith.constant 0 : i32
    return %c0_i32, %c0_i32_0 : i32, i32
  }
  func.func @transform_5(%arg0: i32) -> (i32, i32) {
    %c0_i32 = arith.constant 0 : i32
    %c0_i32_0 = arith.constant 0 : i32
    return %arg0, %c0_i32 : i32, i32
  }
}

</mosaic_0001>

<llo_original>
// kernel: tpu_custom_call.1
$region0: #{tpu_custom_call.1}
  #allocation0 [shape = 'u32[]', space=smem, size = 0x4, offset = 0x4, fixed_abs, tag = 'smem constant byte address 0x4 - core index']
  #allocation1 [shape = 'u32[144,128]{1,0:T(1,128)}', space=vmem, size = 0x12000, scoped, tag = 'internal scratch']
  %s0 = inlined_call_operand.vmem [shape: f32[2,32], index: 0, kind: input, shape index: {}]
  %s1 = inlined_call_operand.vmem [shape: f32[32,32], index: 1, kind: input, shape index: {}]
  %s2 = inlined_call_operand.vmem [shape: f32[1,32], index: 2, kind: input, shape index: {}]
  %s3 = inlined_call_operand.vmem [shape: f32[32,2], index: 3, kind: input, shape index: {}]
  %s4 = inlined_call_operand.vmem [shape: f32[1,2], index: 4, kind: input, shape index: {}]
  %s5 = inlined_call_operand.hbm [shape: f32[2,2], index: 5, kind: output, shape index: {}]
  %s6 = sld [smem:[#allocation0]]
  $region30: #{tpu_custom_call.1} parent=0
    _
  %s8 = ssub.s32 1, %s6
  %s9 = scalar_select 0, %s8, %s6
  $region1: #{tpu_custom_call.1} parent=0
    #allocation2 [shape = 'u8[1024]{0}', space=vmem, size = 0x400, scoped, tag = 'output window, operand 0, single buffered']
    #allocation3 [shape = 's32[1]{0}', space=sflag, size = 0x4, scoped, tag = 'scoped memory for tpu_custom_call.1']
    %10 = vsyncpa [#allocation3], 0
    // Predicated region
    $region2: #{tpu_custom_call.1} parent=1 // pred_check
      _
    $region3: #{tpu_custom_call.1} parent=1 // pred_check_branch
      %12 = sbr.rel (0) target = $region5
    $region4: #{tpu_custom_call.1} parent=1 // pred_region
      _
    $region5: #{tpu_custom_call.1} parent=1 // pred_fallthru
      _
    // Predicated region
    $region6: #{tpu_custom_call.1} parent=1 // pred_check
      _
    $region7: #{tpu_custom_call.1} parent=1 // pred_check_branch
      %14 = sbr.rel (0) target = $region9
    $region8: #{tpu_custom_call.1} parent=1 // pred_region
      _
    $region9: #{tpu_custom_call.1} parent=1 // pred_fallthru
      _
    // Predicated region
    $region10: #{tpu_custom_call.1} parent=1 // pred_check
      _
    $region11: #{tpu_custom_call.1} parent=1 // pred_check_branch
      %16 = sbr.rel (0) target = $region13
    $region12: #{tpu_custom_call.1} parent=1 // pred_region
      _
    $region13: #{tpu_custom_call.1} parent=1 // pred_fallthru
      _
    // Predicated region
    $region14: #{tpu_custom_call.1} parent=1 // pred_check
      _
    $region15: #{tpu_custom_call.1} parent=1 // pred_check_branch
      %18 = sbr.rel (0) target = $region17
    $region16: #{tpu_custom_call.1} parent=1 // pred_region
      _
    $region17: #{tpu_custom_call.1} parent=1 // pred_fallthru
      _
    // Predicated region
    $region18: #{tpu_custom_call.1} parent=1 // pred_check
      _
    $region19: #{tpu_custom_call.1} parent=1 // pred_check_branch
      %20 = sbr.rel (0) target = $region21
    $region20: #{tpu_custom_call.1} parent=1 // pred_region
      _
    $region21: #{tpu_custom_call.1} parent=1 // pred_fallthru
      _
    %v21 = vld [vmem:[%s0] sm:$0x3]
    %v22 = vld [vmem:[%s1] sm:$0xff]
    %v23 = vld [vmem:[%s1 + $0x8] sm:$0xff]
    %v24 = vld [vmem:[%s1 + $0x10] sm:$0xff]
    %v25 = vld [vmem:[%s1 + $0x18] sm:$0xff]
    %v26 = vld [vmem:[%s2] sm:$0x1]
    %v28 = vlaneseq
    %v29 = vshrl.u32 %v28, 7
    %v30 = vsub.s32 0, %v29
    %v31 = vrot.slane %v26, %v30
    %vm33 = vcmask 261120
    %v35 = vsel %vm33, %v21, 0
    %37 = vmatprep.subr.mxu0 0.0
    %38 = vmatpush1.msra.mxu0 %v22
    %39 = vmatprep.subr.mxu0 0.0
    %40 = vmatpush1.msra.mxu0 %v23
    %41 = vmatprep.subr.mxu0 0.0
    %42 = vmatpush1.msra.mxu0 %v24
    %43 = vmatprep.subr.mxu0 0.0
    %44 = vmatpush1.msra.mxu0 %v25
    %45 = vmatprep.subr.mxu0 0.0
    %46 = vmatpush1.msra.mxu0 0.0
    %47 = vmatprep.subr.mxu0 0.0
    %48 = vmatpush1.msra.mxu0 0.0
    %49 = vmatprep.subr.mxu0 0.0
    %50 = vmatpush1.msra.mxu0 0.0
    %51 = vmatprep.subr.mxu0 0.0
    %52 = vmatpush1.msra.mxu0 0.0
    %53 = vmatprep.subr.mxu0 0.0
    %54 = vmatpush1.msra.mxu0 0.0
    %55 = vmatprep.subr.mxu0 0.0
    %56 = vmatpush1.msra.mxu0 0.0
    %57 = vmatprep.subr.mxu0 0.0
    %58 = vmatpush1.msra.mxu0 0.0
    %59 = vmatprep.subr.mxu0 0.0
    %60 = vmatpush1.msra.mxu0 0.0
    %61 = vmatprep.subr.mxu0 0.0
    %62 = vmatpush1.msra.mxu0 0.0
    %63 = vmatprep.subr.mxu0 0.0
    %64 = vmatpush1.msra.mxu0 0.0
    %65 = vmatprep.subr.mxu0 0.0
    %66 = vmatpush1.msra.mxu0 0.0
    %67 = vmatprep.subr.mxu0 0.0
    %68 = vmatpush1.msra.mxu0 0.0
    %69 = vmatprep.subr.mxu0 0.0
    %70 = vmatpush1.msra.mxu0 0.0
    %71 = vmatprep.subr.mxu0 0.0
    %72 = vmatpush1.msra.mxu0 0.0
    %73 = vmatprep.subr.mxu0 0.0
    %74 = vmatpush1.msra.mxu0 0.0
    %75 = vmatprep.subr.mxu0 0.0
    %76 = vmatpush1.msra.mxu0 0.0
    %77 = vmatprep.subr.mxu0 0.0
    %78 = vmatpush1.msra.mxu0 0.0
    %79 = vmatprep.subr.mxu0 0.0
    %80 = vmatpush1.msra.mxu0 0.0
    %81 = vmatprep.subr.mxu0 0.0
    %82 = vmatpush1.msra.mxu0 0.0
    %83 = vmatprep.subr.mxu0 0.0
    %84 = vmatpush1.msra.mxu0 0.0
    %85 = vmatprep.subr.mxu0 0.0
    %86 = vmatpush1.msra.mxu0 0.0
    %87 = vmatprep.subr.mxu0 0.0
    %88 = vmatpush1.msra.mxu0 0.0
    %89 = vmatprep.subr.mxu0 0.0
    %90 = vmatpush1.msra.mxu0 0.0
    %91 = vmatprep.subr.mxu0 0.0
    %92 = vmatpush1.msra.mxu0 0.0
    %93 = vmatprep.subr.mxu0 0.0
    %94 = vmatpush1.msra.mxu0 0.0
    %95 = vmatprep.subr.mxu0 0.0
    %96 = vmatpush1.msra.mxu0 0.0
    %97 = vmatprep.subr.mxu0 0.0
    %98 = vmatpush1.msra.mxu0 0.0
    %99 = vmatprep.subr.mxu0 0.0
    %100 = vmatpush1.msra.mxu0 0.0
    %101 = vmatprep.mubr.f32.mxu0 0.0
    %102 = vmatmul.mubr.f32.gmra.mrb[0].mxu0 %v35
    %v103 = vpop.f32.mrb[0].mxu0
    %v104 = vadd.f32 %v31, %v103
    %v105 = vpop.f32.mrb[0].mxu0
    %106 = vdwg.mxu0
    %v107 = vmax.f32 %v104, 0.0
    %v108 = vld [vmem:[%s3] sm:$0xff]
    %v109 = vld [vmem:[%s3 + $0x8] sm:$0xff]
    %v110 = vld [vmem:[%s3 + $0x10] sm:$0xff]
    %v111 = vld [vmem:[%s3 + $0x18] sm:$0xff]
    %v112 = vld [vmem:[%s4] sm:$0x1]
    %v114 = vlaneseq
    %v115 = vshrl.u32 %v114, 7
    %v116 = vsub.s32 0, %v115
    %v117 = vrot.slane %v112, %v116
    %v120 = vsel %vm33, %v107, 0
    %122 = vmatprep.subr.mxu0 0.0
    %123 = vmatpush1.msra.mxu0 %v108
    %124 = vmatprep.subr.mxu0 0.0
    %125 = vmatpush1.msra.mxu0 %v109
    %126 = vmatprep.subr.mxu0 0.0
    %127 = vmatpush1.msra.mxu0 %v110
    %128 = vmatprep.subr.mxu0 0.0
    %129 = vmatpush1.msra.mxu0 %v111
    %130 = vmatprep.subr.mxu0 0.0
    %131 = vmatpush1.msra.mxu0 0.0
    %132 = vmatprep.subr.mxu0 0.0
    %133 = vmatpush1.msra.mxu0 0.0
    %134 = vmatprep.subr.mxu0 0.0
    %135 = vmatpush1.msra.mxu0 0.0
    %136 = vmatprep.subr.mxu0 0.0
    %137 = vmatpush1.msra.mxu0 0.0
    %138 = vmatprep.subr.mxu0 0.0
    %139 = vmatpush1.msra.mxu0 0.0
    %140 = vmatprep.subr.mxu0 0.0
    %141 = vmatpush1.msra.mxu0 0.0
    %142 = vmatprep.subr.mxu0 0.0
    %143 = vmatpush1.msra.mxu0 0.0
    %144 = vmatprep.subr.mxu0 0.0
    %145 = vmatpush1.msra.mxu0 0.0
    %146 = vmatprep.subr.mxu0 0.0
    %147 = vmatpush1.msra.mxu0 0.0
    %148 = vmatprep.subr.mxu0 0.0
    %149 = vmatpush1.msra.mxu0 0.0
    %150 = vmatprep.subr.mxu0 0.0
    %151 = vmatpush1.msra.mxu0 0.0
    %152 = vmatprep.subr.mxu0 0.0
    %153 = vmatpush1.msra.mxu0 0.0
    %154 = vmatprep.subr.mxu0 0.0
    %155 = vmatpush1.msra.mxu0 0.0
    %156 = vmatprep.subr.mxu0 0.0
    %157 = vmatpush1.msra.mxu0 0.0
    %158 = vmatprep.subr.mxu0 0.0
    %159 = vmatpush1.msra.mxu0 0.0
    %160 = vmatprep.subr.mxu0 0.0
    %161 = vmatpush1.msra.mxu0 0.0
    %162 = vmatprep.subr.mxu0 0.0
    %163 = vmatpush1.msra.mxu0 0.0
    %164 = vmatprep.subr.mxu0 0.0
    %165 = vmatpush1.msra.mxu0 0.0
    %166 = vmatprep.subr.mxu0 0.0
    %167 = vmatpush1.msra.mxu0 0.0
    %168 = vmatprep.subr.mxu0 0.0
    %169 = vmatpush1.msra.mxu0 0.0
    %170 = vmatprep.subr.mxu0 0.0
    %171 = vmatpush1.msra.mxu0 0.0
    %172 = vmatprep.subr.mxu0 0.0
    %173 = vmatpush1.msra.mxu0 0.0
    %174 = vmatprep.subr.mxu0 0.0
    %175 = vmatpush1.msra.mxu0 0.0
    %176 = vmatprep.subr.mxu0 0.0
    %177 = vmatpush1.msra.mxu0 0.0
    %178 = vmatprep.subr.mxu0 0.0
    %179 = vmatpush1.msra.mxu0 0.0
    %180 = vmatprep.subr.mxu0 0.0
    %181 = vmatpush1.msra.mxu0 0.0
    %182 = vmatprep.subr.mxu0 0.0
    %183 = vmatpush1.msra.mxu0 0.0
    %184 = vmatprep.subr.mxu0 0.0
    %185 = vmatpush1.msra.mxu0 0.0
    %186 = vmatprep.mubr.f32.mxu0 0.0
    %187 = vmatmul.mubr.f32.gmra.mrb[0].mxu0 %v120
    %v188 = vpop.f32.mrb[0].mxu0
    %v189 = vadd.f32 %v117, %v188
    %v190 = vpop.f32.mrb[0].mxu0
    %191 = vdwg.mxu0
    %vm192 = vcmask 9216
    %193 = vst.msk [vmem:[#allocation2] sm:$0x3] %vm192, %v189
    // Predicated region
    $region22: #{tpu_custom_call.1} parent=1 // pred_check
      _
    $region23: #{tpu_custom_call.1} parent=1 // pred_check_branch
      %195 = sbr.rel (0) target = $region25
    $region24: #{tpu_custom_call.1} parent=1 // pred_region
      %s197 = ssub.s32 32, 32
      %198 = vsyncadd [#allocation3], %s197
      %s200 = sshll.u32 [#allocation2], 4
      %s201 = int_to_ptr.vmem [resolvable:$true] %s200
      %203 = dma.vmem_to_hbm [thread:$0]  %s201, 32, %s5, [#allocation3]
    $region25: #{tpu_custom_call.1} parent=1 // pred_fallthru
      _
    // Predicated region
    $region26: #{tpu_custom_call.1} parent=1 // pred_check
      _
    $region27: #{tpu_custom_call.1} parent=1 // pred_check_branch
      %205 = sbr.rel (0) target = $region29
    $region28: #{tpu_custom_call.1} parent=1 // pred_region
      %206 = dma.done [#allocation3], 32
    $region29: #{tpu_custom_call.1} parent=1 // pred_fallthru
      _
    %207 = vsyncpa [#allocation3], 1

</llo_original>
